<compile_context>
chip_gen: v7x
topology: tpu7x:2x2x1
jax: 0.10.0
libtpu: 0.0.40
codegen_flags: <defaults>
</compile_context>

<pallas_src>
import math
import jax
import jax.numpy as jnp
from jax.experimental import pallas as pl
from jax.experimental.pallas import tpu as pltpu

_MIB = 1024 * 1024


def _make_pe(max_len: int, d_model: int) -> jnp.ndarray:
    """Sinusoidal positional-encoding buffer, identical to the PyTorch _pe()
    construction (sin at even cols, cos at odd cols)."""
    position = jnp.arange(max_len, dtype=jnp.float32)[:, None]            # (max_len, 1)
    div_term = jnp.exp(
        jnp.arange(0, d_model, 2, dtype=jnp.float32) * (-math.log(10000.0) / d_model)
    )                                                                      # (ceil(d/2),)
    angles = position * div_term                                           # (max_len, ceil(d/2))
    pe = jnp.zeros((max_len, d_model), dtype=jnp.float32)
    pe = pe.at[:, 0::2].set(jnp.sin(angles))
    pe = pe.at[:, 1::2].set(jnp.cos(angles)[:, : d_model // 2])
    return pe


def _add_pe_kernel(x_ref, pe_ref, o_ref):
    # x_ref / o_ref: (tB, tC) lane-dense blocks; pe_ref: (1, tC) -> cheap sublane
    # broadcast. Accumulate in f32, cast on store (no-op for f32 inputs).
    o_ref[...] = (
        x_ref[...].astype(jnp.float32) + pe_ref[...].astype(jnp.float32)
    ).astype(o_ref.dtype)


def _chip_params():
    """Per-generation x-block byte target and whether to force >=2 grid steps
    (multi-TensorCore chips)."""
    try:
        kind = jax.devices()[0].device_kind.lower()
    except Exception:
        kind = ""
    if "v7" in kind or "7x" in kind:
        return 6 * _MIB, True        # v7x: ~3.2 TB/s HBM per TC, 2 TCs/chip
    if "v6" in kind:
        return 4 * _MIB, False       # v6e: ~1.4 TB/s
    return 2 * _MIB, False           # v5e / unknown: ~0.8 TB/s


def _pick_tiles(B: int, N: int, itemsize: int, target_block_bytes: int,
                force_two_steps: bool):
    """Pick (tB, tC) satisfying the (8,128) rule, budgeting with the 8-sublane
    VMEM padding of each block."""
    tB = min(B, 8)                      # 8-row blocks; tail rows masked by Pallas
    rows_padded = 8                     # every block is padded to 8 sublanes in VMEM
    budget_elems = max(target_block_bytes // (rows_padded * itemsize), 128)
    tC = N if N <= budget_elems else (budget_elems // 128) * 128
    # Multi-TC chips: make sure the grid has at least 2 steps so both cores work.
    if force_two_steps and N > 128 and pl.cdiv(N, tC) * pl.cdiv(B, tB) < 2:
        half = (N + 1) // 2
        tC = min(N, ((half + 127) // 128) * 128)
    return tB, tC


def _run_pallas(x2, pe2, tB, tC, grid, vmem_limit, cost, single_buffer_pe):
    B, N = x2.shape
    if single_buffer_pe:
        # pe's block index only changes once per column tile; one buffer suffices
        # and saves a padded (8, tC) VMEM buffer.
        pe_spec = pl.BlockSpec((1, tC), lambda c, b: (0, c),
                               pipeline_mode=pl.Buffered(1))
    else:
        pe_spec = pl.BlockSpec((1, tC), lambda c, b: (0, c))
    return pl.pallas_call(
        _add_pe_kernel,
        out_shape=jax.ShapeDtypeStruct((B, N), x2.dtype),
        grid_spec=pltpu.PrefetchScalarGridSpec(
            num_scalar_prefetch=0,
            grid=grid,                                          # columns outer, batch inner
            in_specs=[
                pl.BlockSpec((tB, tC), lambda c, b: (b, c)),    # x tile
                pe_spec,                                        # pe row tile (const over b)
            ],
            out_specs=pl.BlockSpec((tB, tC), lambda c, b: (b, c)),
        ),
        compiler_params=pltpu.CompilerParams(
            dimension_semantics=("parallel", "parallel"),
            vmem_limit_bytes=int(vmem_limit),
        ),
        cost_estimate=cost,
    )(x2, pe2)


def positional_encoding_forward(x: jnp.ndarray, pe: jnp.ndarray) -> jnp.ndarray:
    """x: (B, S, D); pe: (max_len, D) float32. Returns x + pe[:S] (dtype of x)."""
    B, S, D = x.shape
    N = S * D
    itemsize = jnp.dtype(x.dtype).itemsize

    # Lane-dense views (metadata-only on contiguous arrays); pe cast to x.dtype
    # once in the wrapper to cut its HBM traffic and VMEM footprint.
    x2 = x.reshape(B, N)
    pe2 = pe[:S, :].astype(x.dtype).reshape(1, N)

    target_block_bytes, force_two_steps = _chip_params()
    tB, tC = _pick_tiles(B, N, itemsize, target_block_bytes, force_two_steps)
    grid = (pl.cdiv(N, tC), pl.cdiv(B, tB))

    # VMEM budget with 8-sublane padding on every block:
    #   x (2 bufs) + out (2 bufs) + pe (conservatively 2 bufs even if Buffered(1)
    #   is honored), plus headroom for f32 elementwise temporaries and compiler
    #   internal scratch. Clamped well inside v7x's 64 MiB physical VMEM.
    io_bytes = 6 * 8 * tC * itemsize
    temp_bytes = 2 * 8 * tC * 4
    vmem_limit = max(min(io_bytes + temp_bytes + 4 * _MIB, 56 * _MIB), 24 * _MIB)

    # Advisory: purely memory-bound elementwise add.
    cost = pl.CostEstimate(
        flops=B * N,
        transcendentals=0,
        bytes_accessed=2 * B * N * itemsize + N * itemsize,
    )

    try:
        out2 = _run_pallas(x2, pe2, tB, tC, grid, vmem_limit, cost,
                           single_buffer_pe=True)
    except Exception:
        # Fallback if pipeline_mode=pl.Buffered(1) is rejected on this jax/chip;
        # the vmem_limit above already budgets for a double-buffered pe.
        out2 = _run_pallas(x2, pe2, tB, tC, grid, vmem_limit, cost,
                           single_buffer_pe=False)

    return out2.reshape(B, S, D)


if __name__ == "__main__":
    # Small shapes consistent with the module's forward: (batch, seq, d_model)
    B, S, D = 2, 8, 32
    MAX_LEN = 512

    key = jax.random.PRNGKey(0)
    x = jax.random.normal(key, (B, S, D), dtype=jnp.float32)

    pe = _make_pe(MAX_LEN, D)

    out = jax.block_until_ready(positional_encoding_forward(x, pe))

    # Sanity check against plain-JAX reference.
    ref = x + pe[:S, :][None, :, :]
    assert out.shape == (B, S, D)
    assert jnp.allclose(out, ref, atol=1e-6), "mismatch vs reference"

    print("KERNEL_OK")
</pallas_src>

<mosaic_0001>
module attributes {stable_mosaic.version = 11 : i64} {
  func.func @_add_pe_kernel(%arg0: i32, %arg1: i32, %arg2: memref<2x256xf32, #tpu.memory_space<vmem>>, %arg3: memref<1x256xf32, #tpu.memory_space<vmem>>, %arg4: memref<2x256xf32, #tpu.memory_space<vmem>>) attributes {dimension_semantics = [#tpu.dimension_semantics<parallel>, #tpu.dimension_semantics<parallel>], iteration_bounds = array<i64: 1, 1>, scalar_prefetch = 0 : i64, scratch_operands = 0 : i64, tpu.core_type = #tpu.core_type<tc>, window_params = [{transform_indices = @transform_0, window_bounds = array<i64: 2, 256>}, {pipeline_mode = #tpu.pipeline_mode<synchronous>, transform_indices = @transform_1, window_bounds = array<i64: 1, 256>}, {transform_indices = @transform_2, window_bounds = array<i64: 2, 256>}]} {
    %c0 = arith.constant 0 : index
    %c0_0 = arith.constant 0 : index
    %0 = vector.load %arg2[%c0, %c0_0] : memref<2x256xf32, #tpu.memory_space<vmem>>, vector<2x256xf32>
    %c0_1 = arith.constant 0 : index
    %c0_2 = arith.constant 0 : index
    %1 = vector.load %arg3[%c0_1, %c0_2] : memref<1x256xf32, #tpu.memory_space<vmem>>, vector<1x256xf32>
    %2 = vector.broadcast %1 : vector<1x256xf32> to vector<2x256xf32>
    %3 = arith.addf %0, %2 : vector<2x256xf32>
    %c0_3 = arith.constant 0 : index
    %c0_4 = arith.constant 0 : index
    %4 = vector.load %arg4[%c0_3, %c0_4] : memref<2x256xf32, #tpu.memory_space<vmem>>, vector<2x256xf32>
    tpu.vector_store %arg4[%c0_3, %c0_4], %3 {strides = array<i32>} : memref<2x256xf32, #tpu.memory_space<vmem>>, vector<2x256xf32>,
    return
  }
  func.func @transform_0(%arg0: i32, %arg1: i32) -> (i32, i32) {
    %c0_i32 = arith.constant 0 : i32
    return %arg1, %arg0 : i32, i32
  }
  func.func @transform_1(%arg0: i32, %arg1: i32) -> (i32, i32) {
    %c0_i32 = arith.constant 0 : i32
    %c0_i32_0 = arith.constant 0 : i32
    return %c0_i32, %arg0 : i32, i32
  }
  func.func @transform_2(%arg0: i32, %arg1: i32) -> (i32, i32) {
    %c0_i32 = arith.constant 0 : i32
    return %arg1, %arg0 : i32, i32
  }
}

module attributes {stable_mosaic.version = 11 : i64} {
  func.func @_add_pe_kernel(%arg0: i32, %arg1: i32, %arg2: memref<2x256xf32, #tpu.memory_space<vmem>>, %arg3: memref<1x256xf32, #tpu.memory_space<vmem>>, %arg4: memref<2x256xf32, #tpu.memory_space<vmem>>) attributes {dimension_semantics = [#tpu.dimension_semantics<parallel>, #tpu.dimension_semantics<parallel>], iteration_bounds = array<i64: 1, 1>, scalar_prefetch = 0 : i64, scratch_operands = 0 : i64, tpu.core_type = #tpu.core_type<tc>, window_params = [{transform_indices = @transform_0, window_bounds = array<i64: 2, 256>}, {transform_indices = @transform_1, window_bounds = array<i64: 1, 256>}, {transform_indices = @transform_2, window_bounds = array<i64: 2, 256>}]} {
    %c0 = arith.constant 0 : index
    %c0_0 = arith.constant 0 : index
    %0 = vector.load %arg2[%c0, %c0_0] : memref<2x256xf32, #tpu.memory_space<vmem>>, vector<2x256xf32>
    %c0_1 = arith.constant 0 : index
    %c0_2 = arith.constant 0 : index
    %1 = vector.load %arg3[%c0_1, %c0_2] : memref<1x256xf32, #tpu.memory_space<vmem>>, vector<1x256xf32>
    %2 = vector.broadcast %1 : vector<1x256xf32> to vector<2x256xf32>
    %3 = arith.addf %0, %2 : vector<2x256xf32>
    %c0_3 = arith.constant 0 : index
    %c0_4 = arith.constant 0 : index
    %4 = vector.load %arg4[%c0_3, %c0_4] : memref<2x256xf32, #tpu.memory_space<vmem>>, vector<2x256xf32>
    tpu.vector_store %arg4[%c0_3, %c0_4], %3 {strides = array<i32>} : memref<2x256xf32, #tpu.memory_space<vmem>>, vector<2x256xf32>,
    return
  }
  func.func @transform_0(%arg0: i32, %arg1: i32) -> (i32, i32) {
    %c0_i32 = arith.constant 0 : i32
    return %arg1, %arg0 : i32, i32
  }
  func.func @transform_1(%arg0: i32, %arg1: i32) -> (i32, i32) {
    %c0_i32 = arith.constant 0 : i32
    %c0_i32_0 = arith.constant 0 : i32
    return %c0_i32, %arg0 : i32, i32
  }
  func.func @transform_2(%arg0: i32, %arg1: i32) -> (i32, i32) {
    %c0_i32 = arith.constant 0 : i32
    return %arg1, %arg0 : i32, i32
  }
}

</mosaic_0001>

<llo_original>
// kernel: tpu_custom_call.1
$region0: #{tpu_custom_call.1}
  #allocation0 [shape = 'u32[]', space=smem, size = 0x4, offset = 0x4, fixed_abs, tag = 'smem constant byte address 0x4 - core index']
  #allocation1 [shape = 'u32[144,128]{1,0:T(1,128)}', space=vmem, size = 0x12000, scoped, tag = 'internal scratch']
  %s0 = inlined_call_operand.hbm [shape: f32[2,256], index: 0, kind: input, shape index: {}]
  %s1 = inlined_call_operand.vmem [shape: f32[1,256], index: 1, kind: input, shape index: {}]
  %s2 = inlined_call_operand.hbm [shape: f32[2,256], index: 2, kind: output, shape index: {}]
  %s3 = sld [smem:[#allocation0]]
  $region22: #{tpu_custom_call.1} parent=0
    _
  %s5 = ssub.s32 1, %s3
  %s6 = scalar_select 0, %s5, %s3
  $region1: #{tpu_custom_call.1} parent=0
    #allocation2 [shape = 'u8[2048]{0}', space=vmem, size = 0x800, scoped, tag = 'input window, operand 0, single buffered']
    #allocation3 [shape = 's32[1]{0}', space=sflag, size = 0x4, scoped, tag = 'scoped memory for tpu_custom_call.1']
    #allocation4 [shape = 's32[1]{0}', space=sflag, size = 0x4, scoped, tag = 'scoped memory for tpu_custom_call.1']
    #allocation5 [shape = 'u8[2048]{0}', space=vmem, size = 0x800, scoped, tag = 'output window, operand 0, single buffered']
    %7 = vsyncpa [#allocation3], 0
    %8 = vsyncpa [#allocation4], 0
    // Predicated region
    $region2: #{tpu_custom_call.1} parent=1 // pred_check
      _
    $region3: #{tpu_custom_call.1} parent=1 // pred_check_branch
      %10 = sbr.rel (0) target = $region5
    $region4: #{tpu_custom_call.1} parent=1 // pred_region
      %s12 = ssub.s32 64, 64
      %13 = vsyncadd [#allocation3], %s12
      %s15 = sshll.u32 [#allocation2], 4
      %s16 = int_to_ptr.vmem [resolvable:$true] %s15
      %18 = dma.hbm_to_vmem [thread:$0]  %s0, 64, %s16, [#allocation3]
    $region5: #{tpu_custom_call.1} parent=1 // pred_fallthru
      _
    // Predicated region
    $region6: #{tpu_custom_call.1} parent=1 // pred_check
      _
    $region7: #{tpu_custom_call.1} parent=1 // pred_check_branch
      %20 = sbr.rel (0) target = $region9
    $region8: #{tpu_custom_call.1} parent=1 // pred_region
      _
    $region9: #{tpu_custom_call.1} parent=1 // pred_fallthru
      _
    // Predicated region
    $region10: #{tpu_custom_call.1} parent=1 // pred_check
      _
    $region11: #{tpu_custom_call.1} parent=1 // pred_check_branch
      %22 = sbr.rel (0) target = $region13
    $region12: #{tpu_custom_call.1} parent=1 // pred_region
      %23 = dma.done [#allocation3], 64
    $region13: #{tpu_custom_call.1} parent=1 // pred_fallthru
      _
    %v24 = vld [vmem:[#allocation2] sm:$0xf]
    %v25 = vld [vmem:[%s1] sm:$0x3]
    %v27 = vlaneseq
    %v28 = vshrl.u32 %v27, 7
    %v29 = vsub.s32 0, %v28
    %v30 = vrot.slane %v25, %v29
    %v31 = vlaneseq
    %v32 = vshrl.u32 %v31, 7
    %v33 = vsub.s32 1, %v32
    %v34 = vrot.slane %v25, %v33
    %v35 = vcombine.low %v30, %v34
    %v37 = vunpack.c.l.s4 1983009808
    %v38 = vunpack.c.0.s8 %v37
    %v39 = vlaneseq
    %v40 = vshrl.u32 %v39, 7
    %v41 = vsub.s32 %v38, %v40
    %v42 = vrot.slane %v35, %v41
    %v44 = vadd.f32 %v24, %v42
    %45 = vst [vmem:[#allocation5] sm:$0xf] %v44
    // Predicated region
    $region14: #{tpu_custom_call.1} parent=1 // pred_check
      _
    $region15: #{tpu_custom_call.1} parent=1 // pred_check_branch
      %47 = sbr.rel (0) target = $region17
    $region16: #{tpu_custom_call.1} parent=1 // pred_region
      %s49 = ssub.s32 64, 64
      %50 = vsyncadd [#allocation4], %s49
      %s52 = sshll.u32 [#allocation5], 4
      %s53 = int_to_ptr.vmem [resolvable:$true] %s52
      %55 = dma.vmem_to_hbm [thread:$0]  %s53, 64, %s2, [#allocation4]
    $region17: #{tpu_custom_call.1} parent=1 // pred_fallthru
      _
    // Predicated region
    $region18: #{tpu_custom_call.1} parent=1 // pred_check
      _
    $region19: #{tpu_custom_call.1} parent=1 // pred_check_branch
      %57 = sbr.rel (0) target = $region21
    $region20: #{tpu_custom_call.1} parent=1 // pred_region
      %58 = dma.done [#allocation4], 64
    $region21: #{tpu_custom_call.1} parent=1 // pred_fallthru
      _
    %59 = vsyncpa [#allocation3], 1
    %60 = vsyncpa [#allocation4], 1

// kernel: tpu_custom_call.1
$region0: #{tpu_custom_call.1}
  #allocation0 [shape = 'u32[]', space=smem, size = 0x4, offset = 0x4, fixed_abs, tag = 'smem constant byte address 0x4 - core index']
  #allocation1 [shape = 'u32[144,128]{1,0:T(1,128)}', space=vmem, size = 0x12000, scoped, tag = 'internal scratch']
  %s0 = inlined_call_operand.hbm [shape: f32[2,256], index: 0, kind: input, shape index: {}]
  %s1 = inlined_call_operand.vmem [shape: f32[1,256], index: 1, kind: input, shape index: {}]
  %s2 = inlined_call_operand.hbm [shape: f32[2,256], index: 2, kind: output, shape index: {}]
  %s3 = sld [smem:[#allocation0]]
  $region22: #{tpu_custom_call.1} parent=0
    _
  %s5 = ssub.s32 1, %s3
  %s6 = scalar_select 0, %s5, %s3
  $region1: #{tpu_custom_call.1} parent=0
    #allocation2 [shape = 'u8[2048]{0}', space=vmem, size = 0x800, scoped, tag = 'input window, operand 0, single buffered']
    #allocation3 [shape = 's32[1]{0}', space=sflag, size = 0x4, scoped, tag = 'scoped memory for tpu_custom_call.1']
    #allocation4 [shape = 's32[1]{0}', space=sflag, size = 0x4, scoped, tag = 'scoped memory for tpu_custom_call.1']
    #allocation5 [shape = 'u8[2048]{0}', space=vmem, size = 0x800, scoped, tag = 'output window, operand 0, single buffered']
    %7 = vsyncpa [#allocation3], 0
    %8 = vsyncpa [#allocation4], 0
    // Predicated region
    $region2: #{tpu_custom_call.1} parent=1 // pred_check
      _
    $region3: #{tpu_custom_call.1} parent=1 // pred_check_branch
      %10 = sbr.rel (0) target = $region5
    $region4: #{tpu_custom_call.1} parent=1 // pred_region
      %s12 = ssub.s32 64, 64
      %13 = vsyncadd [#allocation3], %s12
      %s15 = sshll.u32 [#allocation2], 4
      %s16 = int_to_ptr.vmem [resolvable:$true] %s15
      %18 = dma.hbm_to_vmem [thread:$0]  %s0, 64, %s16, [#allocation3]
    $region5: #{tpu_custom_call.1} parent=1 // pred_fallthru
      _
    // Predicated region
    $region6: #{tpu_custom_call.1} parent=1 // pred_check
      _
    $region7: #{tpu_custom_call.1} parent=1 // pred_check_branch
      %20 = sbr.rel (0) target = $region9
    $region8: #{tpu_custom_call.1} parent=1 // pred_region
      _
    $region9: #{tpu_custom_call.1} parent=1 // pred_fallthru
      _
    // Predicated region
    $region10: #{tpu_custom_call.1} parent=1 // pred_check
      _
    $region11: #{tpu_custom_call.1} parent=1 // pred_check_branch
      %22 = sbr.rel (0) target = $region13
    $region12: #{tpu_custom_call.1} parent=1 // pred_region
      %23 = dma.done [#allocation3], 64
    $region13: #{tpu_custom_call.1} parent=1 // pred_fallthru
      _
    %v24 = vld [vmem:[#allocation2] sm:$0xf]
    %v25 = vld [vmem:[%s1] sm:$0x3]
    %v27 = vlaneseq
    %v28 = vshrl.u32 %v27, 7
    %v29 = vsub.s32 0, %v28
    %v30 = vrot.slane %v25, %v29
    %v31 = vlaneseq
    %v32 = vshrl.u32 %v31, 7
    %v33 = vsub.s32 1, %v32
    %v34 = vrot.slane %v25, %v33
    %v35 = vcombine.low %v30, %v34
    %v37 = vunpack.c.l.s4 1983009808
    %v38 = vunpack.c.0.s8 %v37
    %v39 = vlaneseq
    %v40 = vshrl.u32 %v39, 7
    %v41 = vsub.s32 %v38, %v40
    %v42 = vrot.slane %v35, %v41
    %v44 = vadd.f32 %v24, %v42
    %45 = vst [vmem:[#allocation5] sm:$0xf] %v44
    // Predicated region
    $region14: #{tpu_custom_call.1} parent=1 // pred_check
      _
    $region15: #{tpu_custom_call.1} parent=1 // pred_check_branch
      %47 = sbr.rel (0) target = $region17
    $region16: #{tpu_custom_call.1} parent=1 // pred_region
      %s49 = ssub.s32 64, 64
      %50 = vsyncadd [#allocation4], %s49
      %s52 = sshll.u32 [#allocation5], 4
      %s53 = int_to_ptr.vmem [resolvable:$true] %s52
      %55 = dma.vmem_to_hbm [thread:$0]  %s53, 64, %s2, [#allocation4]
    $region17: #{tpu_custom_call.1} parent=1 // pred_fallthru
      _
    // Predicated region
    $region18: #{tpu_custom_call.1} parent=1 // pred_check
      _
    $region19: #{tpu_custom_call.1} parent=1 // pred_check_branch
      %57 = sbr.rel (0) target = $region21
    $region20: #{tpu_custom_call.1} parent=1 // pred_region
      %58 = dma.done [#allocation4], 64
    $region21: #{tpu_custom_call.1} parent=1 // pred_fallthru
      _
    %59 = vsyncpa [#allocation3], 1
    %60 = vsyncpa [#allocation4], 1

</llo_original>
